<compile_context>
chip_gen: v5e
topology: v5e:2x2
jax: 0.10.0
libtpu: 0.0.40
codegen_flags: <defaults>
</compile_context>

<pallas_src>
import jax
import jax.numpy as jnp
import numpy as np
from jax.experimental import pallas as pl
from jax.experimental.pallas import tpu as pltpu

CP = 128  # padded output-channel count (lane-dense output tiles)


def _build_gemm_weights(weight, bias, *, W, OW, KH, KW, stride, cp=CP):
    """Fold the W-direction conv stride into a structured GEMM weight matrix.

    G[kh, w, ow*cp + c] = weight[c, 0, kh, w - stride*ow]  if 0 <= w-stride*ow < KW
                        = 0                                 otherwise (incl. c >= Cout)
    b_row[0, ow*cp + c] = bias[c]  (0 for padded channels)
    """
    Cout, Cin, KH_w, KW_w = weight.shape
    assert (KH_w, KW_w) == (KH, KW) and Cin == 1
    # (Cout, 1, KH, KW) -> (KH, KW, Cout), i.e. w_hwio[kh, kw, c] = weight[c, 0, kh, kw]
    w_hwio = jnp.transpose(weight, (2, 3, 1, 0)).reshape(KH, KW, Cout)
    w_pad = jnp.pad(w_hwio, ((0, 0), (0, 0), (0, cp - Cout)))          # (KH, KW, cp)

    w_idx = jnp.arange(W)[:, None]                                      # (W, 1)
    ow_idx = jnp.arange(OW)[None, :]                                    # (1, OW)
    kw_idx = w_idx - stride * ow_idx                                    # (W, OW)
    valid = (kw_idx >= 0) & (kw_idx < KW)
    kw_safe = jnp.clip(kw_idx, 0, KW - 1)

    g = w_pad[:, kw_safe, :]                                            # (KH, W, OW, cp)
    g = jnp.where(valid[None, :, :, None], g, jnp.zeros((), weight.dtype))
    g = g.reshape(KH, W, OW * cp)                                       # (KH, W, OW*cp)

    b_row = jnp.tile(jnp.pad(bias, (0, cp - Cout)), OW).reshape(1, OW * cp)
    return g.astype(weight.dtype), b_row.astype(bias.dtype)


def torch_conv_forward(x_nhwc, weight, bias, stride=2):
    """NHWC conv equivalent to the PyTorch permute -> Conv2d(1,32,3,s=2) -> permute."""
    B, H, W, Cin = x_nhwc.shape
    Cout, Cin_w, KH, KW = weight.shape       # PyTorch layout (Cout, Cin, KH, KW)
    assert Cin == Cin_w == 1
    OH = (H - KH) // stride + 1
    OW = (W - KW) // stride + 1
    N = OW * CP                              # lane-dense output width (multiple of 128)

    x3 = x_nhwc.reshape(B, H, W)             # squeeze Cin=1 (free layout op)
    g, b_row = _build_gemm_weights(weight, bias, W=W, OW=OW, KH=KH, KW=KW,
                                   stride=stride, cp=CP)

    def kernel(x_ref, g_ref, b_ref, o_ref):
        # x_ref: (H, W)   g_ref: (KH, W, OW*CP)   b_ref: (1, OW*CP)   o_ref: (OH, OW*CP)
        # Row stride of the conv -> sublane-strided loads; column stride is
        # already folded into g_ref.  KH is tiny, unroll statically.
        acc = jnp.dot(x_ref[pl.ds(0, OH, stride=stride), :], g_ref[0],
                      preferred_element_type=jnp.float32)
        for kh in range(1, KH):
            acc = acc + jnp.dot(x_ref[pl.ds(kh, OH, stride=stride), :], g_ref[kh],
                                preferred_element_type=jnp.float32)
        o_ref[...] = (acc + b_ref[...]).astype(o_ref.dtype)

    flops = 2 * B * OH * OW * KH * KW * Cin * Cout
    bytes_accessed = 4 * (x3.size + g.size + b_row.size + B * OH * N)

    out = pl.pallas_call(
        kernel,
        out_shape=jax.ShapeDtypeStruct((B, OH, N), x_nhwc.dtype),
        grid=(B,),                                   # scales to a real M-tiled grid for big inputs
        in_specs=[
            pl.BlockSpec((None, H, W), lambda b: (b, 0, 0)),      # per-batch (H, W) tile
            pl.BlockSpec((KH, W, N), lambda b: (0, 0, 0)),        # weights resident in VMEM
            pl.BlockSpec((1, N), lambda b: (0, 0)),               # bias row
        ],
        out_specs=pl.BlockSpec((None, OH, N), lambda b: (b, 0, 0)),
        compiler_params=pltpu.CompilerParams(
            dimension_semantics=("parallel",),        # megacore split on v7x
        ),
        cost_estimate=pl.CostEstimate(
            flops=flops, transcendentals=0, bytes_accessed=bytes_accessed),
    )(x3, g, b_row)

    # (B, OH, OW*128) -> (B, OH, OW, 128) is a free row-major split; then drop pad lanes.
    return out.reshape(B, OH, OW, CP)[..., :Cout]


if __name__ == "__main__":
    # Shapes implied by the module: Conv2d(1, 32, 3, stride=2) applied to NHWC input.
    B, H, W, Cin, Cout = 2, 16, 16, 1, 32
    constant_init = 0.1  # nn.init.constant_(param, constant_init) on all parameters

    key = jax.random.PRNGKey(0)
    x = jax.random.normal(key, (B, H, W, Cin), dtype=jnp.float32)
    weight = jnp.full((Cout, Cin, 3, 3), constant_init, dtype=jnp.float32)
    bias = jnp.full((Cout,), constant_init, dtype=jnp.float32)

    fwd = jax.jit(torch_conv_forward)
    out = jax.block_until_ready(fwd(x, weight, bias))

    # Pure-JAX reference (no torch): NHWC conv with HWIO weights.
    w_hwio = jnp.transpose(weight, (2, 3, 1, 0))  # (KH, KW, Cin, Cout)
    ref = jax.lax.conv_general_dilated(
        x, w_hwio, window_strides=(2, 2), padding="VALID",
        dimension_numbers=("NHWC", "HWIO", "NHWC"),
    ) + bias.reshape(1, 1, 1, Cout)

    assert out.shape == (B, 7, 7, Cout), out.shape
    np.testing.assert_allclose(np.asarray(out), np.asarray(ref), rtol=1e-5, atol=1e-5)
    print("KERNEL_OK")
</pallas_src>

<mosaic_0001>
module attributes {stable_mosaic.version = 11 : i64} {
  func.func @kernel(%arg0: i32, %arg1: memref<1x16x16xf32, #tpu.memory_space<vmem>>, %arg2: memref<3x16x896xf32, #tpu.memory_space<vmem>>, %arg3: memref<1x896xf32, #tpu.memory_space<vmem>>, %arg4: memref<1x7x896xf32, #tpu.memory_space<vmem>>) attributes {dimension_semantics = [#tpu.dimension_semantics<parallel>], iteration_bounds = array<i64: 2>, scalar_prefetch = 0 : i64, scratch_operands = 0 : i64, tpu.core_type = #tpu.core_type<tc>, window_params = [{transform_indices = @transform_0, window_bounds = array<i64: 1, 16, 16>}, {pipeline_mode = #tpu.pipeline_mode<synchronous>, transform_indices = @transform_1, window_bounds = array<i64: 3, 16, 896>}, {pipeline_mode = #tpu.pipeline_mode<synchronous>, transform_indices = @transform_2, window_bounds = array<i64: 1, 896>}, {transform_indices = @transform_3, window_bounds = array<i64: 1, 7, 896>}]} {
    %c0 = arith.constant 0 : index
    %c0_0 = arith.constant 0 : index
    %c0_1 = arith.constant 0 : index
    %0 = tpu.strided_load %arg1[%c0, %c0_0, %c0_1] {strides = array<i32: 1, 2, 1>} : memref<1x16x16xf32, #tpu.memory_space<vmem>>, vector<1x7x16xf32>
    %1 = vector.shape_cast %0 : vector<1x7x16xf32> to vector<7x16xf32>
    %c0_2 = arith.constant 0 : index
    %c0_3 = arith.constant 0 : index
    %c0_4 = arith.constant 0 : index
    %2 = vector.load %arg2[%c0_2, %c0_3, %c0_4] : memref<3x16x896xf32, #tpu.memory_space<vmem>>, vector<1x16x896xf32>
    %3 = vector.shape_cast %2 : vector<1x16x896xf32> to vector<16x896xf32>
    %cst = arith.constant dense<0.000000e+00> : vector<7x896xf32>
    %4 = tpu.matmul %1, %3, %cst {dimension_numbers = #tpu.dot_dimension_numbers<[1], [0], [0], [1], [0, 0, 1, 1], [], []>} : vector<7x16xf32>, vector<16x896xf32>, vector<7x896xf32> -> vector<7x896xf32>
    %c0_5 = arith.constant 0 : index
    %c1 = arith.constant 1 : index
    %c0_6 = arith.constant 0 : index
    %5 = tpu.strided_load %arg1[%c0_5, %c1, %c0_6] {strides = array<i32: 1, 2, 1>} : memref<1x16x16xf32, #tpu.memory_space<vmem>>, vector<1x7x16xf32>
    %6 = vector.shape_cast %5 : vector<1x7x16xf32> to vector<7x16xf32>
    %c1_7 = arith.constant 1 : index
    %c0_8 = arith.constant 0 : index
    %c0_9 = arith.constant 0 : index
    %7 = vector.load %arg2[%c1_7, %c0_8, %c0_9] : memref<3x16x896xf32, #tpu.memory_space<vmem>>, vector<1x16x896xf32>
    %8 = vector.shape_cast %7 : vector<1x16x896xf32> to vector<16x896xf32>
    %cst_10 = arith.constant dense<0.000000e+00> : vector<7x896xf32>
    %9 = tpu.matmul %6, %8, %cst_10 {dimension_numbers = #tpu.dot_dimension_numbers<[1], [0], [0], [1], [0, 0, 1, 1], [], []>} : vector<7x16xf32>, vector<16x896xf32>, vector<7x896xf32> -> vector<7x896xf32>
    %10 = arith.addf %4, %9 : vector<7x896xf32>
    %c0_11 = arith.constant 0 : index
    %c2 = arith.constant 2 : index
    %c0_12 = arith.constant 0 : index
    %11 = tpu.strided_load %arg1[%c0_11, %c2, %c0_12] {strides = array<i32: 1, 2, 1>} : memref<1x16x16xf32, #tpu.memory_space<vmem>>, vector<1x7x16xf32>
    %12 = vector.shape_cast %11 : vector<1x7x16xf32> to vector<7x16xf32>
    %c2_13 = arith.constant 2 : index
    %c0_14 = arith.constant 0 : index
    %c0_15 = arith.constant 0 : index
    %13 = vector.load %arg2[%c2_13, %c0_14, %c0_15] : memref<3x16x896xf32, #tpu.memory_space<vmem>>, vector<1x16x896xf32>
    %14 = vector.shape_cast %13 : vector<1x16x896xf32> to vector<16x896xf32>
    %cst_16 = arith.constant dense<0.000000e+00> : vector<7x896xf32>
    %15 = tpu.matmul %12, %14, %cst_16 {dimension_numbers = #tpu.dot_dimension_numbers<[1], [0], [0], [1], [0, 0, 1, 1], [], []>} : vector<7x16xf32>, vector<16x896xf32>, vector<7x896xf32> -> vector<7x896xf32>
    %16 = arith.addf %10, %15 : vector<7x896xf32>
    %c0_17 = arith.constant 0 : index
    %c0_18 = arith.constant 0 : index
    %17 = vector.load %arg3[%c0_17, %c0_18] : memref<1x896xf32, #tpu.memory_space<vmem>>, vector<1x896xf32>
    %18 = vector.broadcast %17 : vector<1x896xf32> to vector<7x896xf32>
    %19 = arith.addf %16, %18 : vector<7x896xf32>
    %c0_19 = arith.constant 0 : index
    %c0_20 = arith.constant 0 : index
    %c0_21 = arith.constant 0 : index
    %20 = vector.load %arg4[%c0_19, %c0_20, %c0_21] : memref<1x7x896xf32, #tpu.memory_space<vmem>>, vector<1x7x896xf32>
    %21 = vector.shape_cast %20 : vector<1x7x896xf32> to vector<7x896xf32>
    %22 = vector.shape_cast %19 : vector<7x896xf32> to vector<1x7x896xf32>
    tpu.vector_store %arg4[%c0_19, %c0_20, %c0_21], %22 {strides = array<i32>} : memref<1x7x896xf32, #tpu.memory_space<vmem>>, vector<1x7x896xf32>,
    return
  }
  func.func @transform_0(%arg0: i32) -> (i32, i32, i32) {
    %c0_i32 = arith.constant 0 : i32
    %c0_i32_0 = arith.constant 0 : i32
    %c0_i32_1 = arith.constant 0 : i32
    return %arg0, %c0_i32, %c0_i32_0 : i32, i32, i32
  }
  func.func @transform_1(%arg0: i32) -> (i32, i32, i32) {
    %c0_i32 = arith.constant 0 : i32
    %c0_i32_0 = arith.constant 0 : i32
    %c0_i32_1 = arith.constant 0 : i32
    %c0_i32_2 = arith.constant 0 : i32
    return %c0_i32, %c0_i32_0, %c0_i32_1 : i32, i32, i32
  }
  func.func @transform_2(%arg0: i32) -> (i32, i32) {
    %c0_i32 = arith.constant 0 : i32
    %c0_i32_0 = arith.constant 0 : i32
    %c0_i32_1 = arith.constant 0 : i32
    return %c0_i32, %c0_i32_0 : i32, i32
  }
  func.func @transform_3(%arg0: i32) -> (i32, i32, i32) {
    %c0_i32 = arith.constant 0 : i32
    %c0_i32_0 = arith.constant 0 : i32
    %c0_i32_1 = arith.constant 0 : i32
    return %arg0, %c0_i32, %c0_i32_0 : i32, i32, i32
  }
}

</mosaic_0001>

<llo_original>
// kernel: torch_conv_forward.1
$region0: #{torch_conv_forward.1}
  #allocation0 [shape = 'u32[]', space=smem, size = 0x4, offset = 0x4, fixed_abs, tag = 'smem constant byte address 0x4 - core index']
  #allocation1 [shape = 'u32[72,128]{1,0:T(1,128)}', space=vmem, size = 0x9000, scoped, tag = 'internal scratch']
  %s0 = inlined_call_operand.vmem [shape: f32[2,16,16], index: 0, kind: input, shape index: {}]
  %s1 = inlined_call_operand.vmem [shape: f32[3,16,896], index: 1, kind: input, shape index: {}]
  %s2 = inlined_call_operand.vmem [shape: f32[1,896], index: 2, kind: input, shape index: {}]
  %s3 = inlined_call_operand.vmem [shape: f32[2,7,896], index: 3, kind: output, shape index: {}]
  %s4 = sld [smem:[#allocation0]]
  $region45: #{torch_conv_forward.1} parent=0
    _
  %s6 = ssub.s32 1, %s4
  %s7 = scalar_select 0, %s6, %s4
  loop: start=0, step=1, limit=4
  $region2: #{torch_conv_forward.1} parent=0 // loop_pre_header
    _
  $region3: #{torch_conv_forward.1} parent=0 // loop_header
    %s9 = sphi 0, %s13
    %p10 = scmp.ge.s32.totalorder %s9, 4
    %s19 = sphi 0, %s21
    %s22 = sphi 0, %s19
    %s23 = sphi 0, %s22
    %s39 = sphi 0, %s23
    %s43 = sphi 0, %s43
    %s45 = sphi 0, %s43
    %s46 = sphi 0, %s45
    %s60 = sphi 0, %s46
    %s64 = sphi 0, %s64
    %s66 = sphi 0, %s64
    %s67 = sphi 0, %s66
    %s81 = sphi 0, %s67
    %s87 = sphi 0, %s89
    %s90 = sphi 0, %s87
    %s91 = sphi 0, %s90
    %s107 = sphi 0, %s91
  $region4: #{torch_conv_forward.1} parent=0 // loop_header_branch
    %12 = sbr.rel (%p10) target = $region8
  $region5: #{torch_conv_forward.1} parent=0 // loop_body
    %s14 = ssub.s32 %s9, 1
    %s15 = ssub.s32 %s9, 2
    %s16 = sadd.s32 %s9, 1
    %s17 = ssub.s32 %s9, %s16
    %p18 = scmp.eq.s32.totalorder %s17, 0
    %s20 = sadd.s32 %s19, 1
    %s21 = scalar_select %p18, %s19, %s20
    %p24 = pneg %p18
    %p25 = scmp.eq.s32.totalorder %s9, 1
    %p26 = por %p24, %p25
    %p27 = scmp.ne.s32.totalorder %s19, %s22
    %p28 = scmp.eq.s32.totalorder %s9, 0
    %p29 = por %p27, %p28
    %p30 = scmp.ne.s32.totalorder %s19, %s22
    %p31 = scmp.eq.s32.totalorder %s14, 1
    %p32 = por %p30, %p31
    %p33 = scmp.ne.s32.totalorder %s22, %s23
    %p34 = scmp.eq.s32.totalorder %s14, 0
    %p35 = por %p33, %p34
    %p36 = scmp.ne.s32.totalorder %s22, %s23
    %p37 = scmp.eq.s32.totalorder %s15, 1
    %p38 = por %p36, %p37
    %p40 = scmp.ne.s32.totalorder %s23, %s39
    %p41 = scmp.eq.s32.totalorder %s15, 0
    %p42 = por %p40, %p41
    %s44 = sadd.s32 %s43, 1
    %p47 = scmp.eq.s32.totalorder %s9, 1
    %p48 = scmp.ne.s32.totalorder %s43, %s45
    %p49 = scmp.eq.s32.totalorder %s9, 0
    %p50 = por %p48, %p49
    %p51 = scmp.ne.s32.totalorder %s43, %s45
    %p52 = scmp.eq.s32.totalorder %s14, 1
    %p53 = por %p51, %p52
    %p54 = scmp.ne.s32.totalorder %s45, %s46
    %p55 = scmp.eq.s32.totalorder %s14, 0
    %p56 = por %p54, %p55
    %p57 = scmp.ne.s32.totalorder %s45, %s46
    %p58 = scmp.eq.s32.totalorder %s15, 1
    %p59 = por %p57, %p58
    %p61 = scmp.ne.s32.totalorder %s46, %s60
    %p62 = scmp.eq.s32.totalorder %s15, 0
    %p63 = por %p61, %p62
    %s65 = sadd.s32 %s64, 1
    %p68 = scmp.eq.s32.totalorder %s9, 1
    %p69 = scmp.ne.s32.totalorder %s64, %s66
    %p70 = scmp.eq.s32.totalorder %s9, 0
    %p71 = por %p69, %p70
    %p72 = scmp.ne.s32.totalorder %s64, %s66
    %p73 = scmp.eq.s32.totalorder %s14, 1
    %p74 = por %p72, %p73
    %p75 = scmp.ne.s32.totalorder %s66, %s67
    %p76 = scmp.eq.s32.totalorder %s14, 0
    %p77 = por %p75, %p76
    %p78 = scmp.ne.s32.totalorder %s66, %s67
    %p79 = scmp.eq.s32.totalorder %s15, 1
    %p80 = por %p78, %p79
    %p82 = scmp.ne.s32.totalorder %s67, %s81
    %p83 = scmp.eq.s32.totalorder %s15, 0
    %p84 = por %p82, %p83
    %s85 = ssub.s32 %s9, %s16
    %p86 = scmp.eq.s32.totalorder %s85, 0
    %s88 = sadd.s32 %s87, 1
    %s89 = scalar_select %p86, %s87, %s88
    %p92 = pneg %p86
    %p93 = scmp.eq.s32.totalorder %s9, 1
    %p94 = por %p92, %p93
    %p95 = scmp.ne.s32.totalorder %s87, %s90
    %p96 = scmp.eq.s32.totalorder %s9, 0
    %p97 = por %p95, %p96
    %p98 = scmp.ne.s32.totalorder %s87, %s90
    %p99 = scmp.eq.s32.totalorder %s14, 1
    %p100 = por %p98, %p99
    %p101 = scmp.ne.s32.totalorder %s90, %s91
    %p102 = scmp.eq.s32.totalorder %s14, 0
    %p103 = por %p101, %p102
    %p104 = scmp.ne.s32.totalorder %s90, %s91
    %p105 = scmp.eq.s32.totalorder %s15, 1
    %p106 = por %p104, %p105
    %p108 = scmp.ne.s32.totalorder %s91, %s107
    %p109 = scmp.eq.s32.totalorder %s15, 0
    %p110 = por %p108, %p109
    %p111 = scmp.le.s32.totalorder 1, %s9
    %p112 = scmp.lt.s32.totalorder %s9, 3
    %p113 = pnand %p111, %p112
    %p114 = pneg %p113
    // Predicated region
    $region9: #{torch_conv_forward.1} parent=5 // pred_check
      _
    $region10: #{torch_conv_forward.1} parent=5 // pred_check_branch
      %116 = sbr.rel (%p113) target = $region12
    $region11: #{torch_conv_forward.1} parent=5 // pred_region
      %s117 = ssub.s32 %s9, 1
      // Predicated region
      $region13: #{torch_conv_forward.1} parent=11 // pred_check
        %p118 = pneg %p56
      $region14: #{torch_conv_forward.1} parent=11 // pred_check_branch
        %120 = sbr.rel (%p118) target = $region16
      $region15: #{torch_conv_forward.1} parent=11 // pred_region
        _
      $region16: #{torch_conv_forward.1} parent=11 // pred_fallthru
        _
      // Predicated region
      $region17: #{torch_conv_forward.1} parent=11 // pred_check
        %p121 = pneg %p77
      $region18: #{torch_conv_forward.1} parent=11 // pred_check_branch
        %123 = sbr.rel (%p121) target = $region20
      $region19: #{torch_conv_forward.1} parent=11 // pred_region
        _
      $region20: #{torch_conv_forward.1} parent=11 // pred_fallthru
        _
    $region12: #{torch_conv_forward.1} parent=5 // pred_fallthru
      _
    %p124 = scmp.lt.s32.totalorder %s9, 2
    // Predicated region
    $region21: #{torch_conv_forward.1} parent=5 // pred_check
      %p125 = pneg %p124
    $region22: #{torch_conv_forward.1} parent=5 // pred_check_branch
      %127 = sbr.rel (%p125) target = $region24
    $region23: #{torch_conv_forward.1} parent=5 // pred_region
      // Predicated region
      $region25: #{torch_conv_forward.1} parent=23 // pred_check
        %p128 = pneg %p29
      $region26: #{torch_conv_forward.1} parent=23 // pred_check_branch
        %130 = sbr.rel (%p128) target = $region28
      $region27: #{torch_conv_forward.1} parent=23 // pred_region
        %p131 = scmp.lt.s32.totalorder %s9, 1
        %s132 = scalar_select %p131, %s9, 1
        %s133 = smul.addr %s132, 2
        %s134 = smul.addr %s133, 8
        %s135 = scalar_lea.vmem %s0, %s134
      $region28: #{torch_conv_forward.1} parent=23 // pred_fallthru
        _
    $region24: #{torch_conv_forward.1} parent=5 // pred_fallthru
      _
    %p136 = scmp.le.s32.totalorder 1, %s9
    %p137 = scmp.lt.s32.totalorder %s9, 3
    %p138 = pnand %p136, %p137
    %p139 = pneg %p138
    // Predicated region
    $region29: #{torch_conv_forward.1} parent=5 // pred_check
      _
    $region30: #{torch_conv_forward.1} parent=5 // pred_check_branch
      %141 = sbr.rel (%p138) target = $region32
    $region31: #{torch_conv_forward.1} parent=5 // pred_region
      %s142 = ssub.s32 %s9, 1
      %p143 = scmp.lt.s32.totalorder %s14, 1
      %s144 = scalar_select %p143, %s14, 1
      %s145 = smul.addr %s144, 2
      %s146 = smul.addr %s145, 8
      %s147 = scalar_lea.vmem %s0, %s146
      %p148 = pneg %p35
      %p149 = pneg %p32
      %p150 = pneg %p56
      %p151 = pneg %p53
      %p152 = pneg %p77
      %p153 = pneg %p74
      %p154 = pneg %p103
      %p155 = pneg %p100
      %p156 = scmp.lt.s32.totalorder %s14, 1
      %s157 = scalar_select %p156, %s14, 1
      %s158 = smul.addr %s157, 7
      %s159 = smul.addr %s158, 8
      %s160 = scalar_lea.vmem %s3, %s159
      %p161 = scmp.lt.s32.totalorder %s14, 1
      %s162 = scalar_select %p161, %s14, 1
      %s163 = smul.addr %s162, 2
      %s164 = smul.addr %s163, 8
      %s165 = scalar_lea.vmem %s0, %s164
      %p166 = scmp.lt.s32.totalorder %s14, 1
      %s167 = scalar_select %p166, %s14, 1
      %s168 = smul.addr %s167, 7
      %s169 = smul.addr %s168, 8
      %s170 = scalar_lea.vmem %s3, %s169
      %v171 = vld [vmem:[%s165] ss:$2 sm:$0x7f]
      %v172 = vld [vmem:[%s1] sm:$0xff]
      %v173 = vld [vmem:[%s1 + $0x8] sm:$0xff]
      %v174 = vld [vmem:[%s1 + $0x10] sm:$0xff]
      %v175 = vld [vmem:[%s1 + $0x18] sm:$0xff]
      %v176 = vld [vmem:[%s1 + $0x20] sm:$0xff]
      %v177 = vld [vmem:[%s1 + $0x28] sm:$0xff]
      %v178 = vld [vmem:[%s1 + $0x30] sm:$0xff]
      %v179 = vld [vmem:[%s1 + $0x38] sm:$0xff]
      %v180 = vld [vmem:[%s1 + $0x40] sm:$0xff]
      %v181 = vld [vmem:[%s1 + $0x48] sm:$0xff]
      %v182 = vld [vmem:[%s1 + $0x50] sm:$0xff]
      %v183 = vld [vmem:[%s1 + $0x58] sm:$0xff]
      %v184 = vld [vmem:[%s1 + $0x60] sm:$0xff]
      %v185 = vld [vmem:[%s1 + $0x68] sm:$0xff]
      %s186 = scalar_lea.vmem %s165, 1
      %v187 = vld [vmem:[%s186] ss:$2 sm:$0x7f]
      %s188 = scalar_lea.vmem %s1, 112
      %v189 = vld [vmem:[%s188] sm:$0xff]
      %v190 = vld [vmem:[%s188 + $0x8] sm:$0xff]
      %v191 = vld [vmem:[%s188 + $0x10] sm:$0xff]
      %v192 = vld [vmem:[%s188 + $0x18] sm:$0xff]
      %v193 = vld [vmem:[%s188 + $0x20] sm:$0xff]
      %v194 = vld [vmem:[%s188 + $0x28] sm:$0xff]
      %v195 = vld [vmem:[%s188 + $0x30] sm:$0xff]
      %v196 = vld [vmem:[%s188 + $0x38] sm:$0xff]
      %v197 = vld [vmem:[%s188 + $0x40] sm:$0xff]
      %v198 = vld [vmem:[%s188 + $0x48] sm:$0xff]
      %v199 = vld [vmem:[%s188 + $0x50] sm:$0xff]
      %v200 = vld [vmem:[%s188 + $0x58] sm:$0xff]
      %v201 = vld [vmem:[%s188 + $0x60] sm:$0xff]
      %v202 = vld [vmem:[%s188 + $0x68] sm:$0xff]
      %vm203 = vcmask 130048
      %v205 = vsel %vm203, %v187, 0
      %207 = vmatpush.msra.mxu0 0.0
      %208 = vmatpush.msra.mxu0 0.0
      %209 = vmatpush.msra.mxu0 0.0
      %210 = vmatpush.msra.mxu0 0.0
      %211 = vmatpush.msra.mxu0 0.0
      %212 = vmatpush.msra.mxu0 0.0
      %213 = vmatpush.msra.mxu0 0.0
      %214 = vmatpush.msra.mxu0 0.0
      %215 = vmatpush.msra.mxu0 0.0
      %216 = vmatpush.msra.mxu0 0.0
      %217 = vmatpush.msra.mxu0 0.0
      %218 = vmatpush.msra.mxu0 0.0
      %219 = vmatpush.msra.mxu0 0.0
      %220 = vmatpush.msra.mxu0 0.0
      %221 = vmatpush.msra.mxu0 %v196
      %222 = vmatpush.msra.mxu0 %v189
      %223 = vmatmul.f32.gmra.mxu0 %v205
      %v224 = vpop.f32.mrf.mxu0
      %v225 = vadd.f32 0.0, %v224
      %226 = vdwg.mxu0
      %227 = vmatpush.msra.mxu0 0.0
      %228 = vmatpush.msra.mxu0 0.0
      %229 = vmatpush.msra.mxu0 0.0
      %230 = vmatpush.msra.mxu0 0.0
      %231 = vmatpush.msra.mxu0 0.0
      %232 = vmatpush.msra.mxu0 0.0
      %233 = vmatpush.msra.mxu0 0.0
      %234 = vmatpush.msra.mxu0 0.0
      %235 = vmatpush.msra.mxu0 0.0
      %236 = vmatpush.msra.mxu0 0.0
      %237 = vmatpush.msra.mxu0 0.0
      %238 = vmatpush.msra.mxu0 0.0
      %239 = vmatpush.msra.mxu0 0.0
      %240 = vmatpush.msra.mxu0 0.0
      %241 = vmatpush.msra.mxu0 %v197
      %242 = vmatpush.msra.mxu0 %v190
      %243 = vmatmul.f32.gmra.mxu0 %v205
      %v244 = vpop.f32.mrf.mxu0
      %v245 = vadd.f32 0.0, %v244
      %246 = vdwg.mxu0
      %247 = vmatpush.msra.mxu0 0.0
      %248 = vmatpush.msra.mxu0 0.0
      %249 = vmatpush.msra.mxu0 0.0
      %250 = vmatpush.msra.mxu0 0.0
      %251 = vmatpush.msra.mxu0 0.0
      %252 = vmatpush.msra.mxu0 0.0
      %253 = vmatpush.msra.mxu0 0.0
      %254 = vmatpush.msra.mxu0 0.0
      %255 = vmatpush.msra.mxu0 0.0
      %256 = vmatpush.msra.mxu0 0.0
      %257 = vmatpush.msra.mxu0 0.0
      %258 = vmatpush.msra.mxu0 0.0
      %259 = vmatpush.msra.mxu0 0.0
      %260 = vmatpush.msra.mxu0 0.0
      %261 = vmatpush.msra.mxu0 %v198
      %262 = vmatpush.msra.mxu0 %v191
      %263 = vmatmul.f32.gmra.mxu0 %v205
      %v264 = vpop.f32.mrf.mxu0
      %v265 = vadd.f32 0.0, %v264
      %266 = vdwg.mxu0
      %267 = vmatpush.msra.mxu0 0.0
      %268 = vmatpush.msra.mxu0 0.0
      %269 = vmatpush.msra.mxu0 0.0
      %270 = vmatpush.msra.mxu0 0.0
      %271 = vmatpush.msra.mxu0 0.0
      %272 = vmatpush.msra.mxu0 0.0
      %273 = vmatpush.msra.mxu0 0.0
      %274 = vmatpush.msra.mxu0 0.0
      %275 = vmatpush.msra.mxu0 0.0
      %276 = vmatpush.msra.mxu0 0.0
      %277 = vmatpush.msra.mxu0 0.0
      %278 = vmatpush.msra.mxu0 0.0
      %279 = vmatpush.msra.mxu0 0.0
      %280 = vmatpush.msra.mxu0 0.0
      %281 = vmatpush.msra.mxu0 %v199
      %282 = vmatpush.msra.mxu0 %v192
      %283 = vmatmul.f32.gmra.mxu0 %v205
      %v284 = vpop.f32.mrf.mxu0
      %v285 = vadd.f32 0.0, %v284
      %286 = vdwg.mxu0
      %287 = vmatpush.msra.mxu0 0.0
      %288 = vmatpush.msra.mxu0 0.0
      %289 = vmatpush.msra.mxu0 0.0
      %290 = vmatpush.msra.mxu0 0.0
      %291 = vmatpush.msra.mxu0 0.0
      %292 = vmatpush.msra.mxu0 0.0
      %293 = vmatpush.msra.mxu0 0.0
      %294 = vmatpush.msra.mxu0 0.0
      %295 = vmatpush.msra.mxu0 0.0
      %296 = vmatpush.msra.mxu0 0.0
      %297 = vmatpush.msra.mxu0 0.0
      %298 = vmatpush.msra.mxu0 0.0
      %299 = vmatpush.msra.mxu0 0.0
      %300 = vmatpush.msra.mxu0 0.0
      %301 = vmatpush.msra.mxu0 %v200
      %302 = vmatpush.msra.mxu0 %v193
      %303 = vmatmul.f32.gmra.mxu0 %v205
      %v304 = vpop.f32.mrf.mxu0
      %v305 = vadd.f32 0.0, %v304
      %306 = vdwg.mxu0
      %307 = vmatpush.msra.mxu0 0.0
      %308 = vmatpush.msra.mxu0 0.0
      %309 = vmatpush.msra.mxu0 0.0
      %310 = vmatpush.msra.mxu0 0.0
      %311 = vmatpush.msra.mxu0 0.0
      %312 = vmatpush.msra.mxu0 0.0
      %313 = vmatpush.msra.mxu0 0.0
      %314 = vmatpush.msra.mxu0 0.0
      %315 = vmatpush.msra.mxu0 0.0
      %316 = vmatpush.msra.mxu0 0.0
      %317 = vmatpush.msra.mxu0 0.0
      %318 = vmatpush.msra.mxu0 0.0
      %319 = vmatpush.msra.mxu0 0.0
      %320 = vmatpush.msra.mxu0 0.0
      %321 = vmatpush.msra.mxu0 %v201
      %322 = vmatpush.msra.mxu0 %v194
      %323 = vmatmul.f32.gmra.mxu0 %v205
      %v324 = vpop.f32.mrf.mxu0
      %v325 = vadd.f32 0.0, %v324
      %326 = vdwg.mxu0
      %327 = vmatpush.msra.mxu0 0.0
      %328 = vmatpush.msra.mxu0 0.0
      %329 = vmatpush.msra.mxu0 0.0
      %330 = vmatpush.msra.mxu0 0.0
      %331 = vmatpush.msra.mxu0 0.0
      %332 = vmatpush.msra.mxu0 0.0
      %333 = vmatpush.msra.mxu0 0.0
      %334 = vmatpush.msra.mxu0 0.0
      %335 = vmatpush.msra.mxu0 0.0
      %336 = vmatpush.msra.mxu0 0.0
      %337 = vmatpush.msra.mxu0 0.0
      %338 = vmatpush.msra.mxu0 0.0
      %339 = vmatpush.msra.mxu0 0.0
      %340 = vmatpush.msra.mxu0 0.0
      %341 = vmatpush.msra.mxu0 %v202
      %342 = vmatpush.msra.mxu0 %v195
      %343 = vmatmul.f32.gmra.mxu0 %v205
      %v344 = vpop.f32.mrf.mxu0
      %v345 = vadd.f32 0.0, %v344
      %346 = vdwg.mxu0
      %v348 = vsel %vm203, %v171, 0
      %350 = vmatpush.msra.mxu0 0.0
      %351 = vmatpush.msra.mxu0 0.0
      %352 = vmatpush.msra.mxu0 0.0
      %353 = vmatpush.msra.mxu0 0.0
      %354 = vmatpush.msra.mxu0 0.0
      %355 = vmatpush.msra.mxu0 0.0
      %356 = vmatpush.msra.mxu0 0.0
      %357 = vmatpush.msra.mxu0 0.0
      %358 = vmatpush.msra.mxu0 0.0
      %359 = vmatpush.msra.mxu0 0.0
      %360 = vmatpush.msra.mxu0 0.0
      %361 = vmatpush.msra.mxu0 0.0
      %362 = vmatpush.msra.mxu0 0.0
      %363 = vmatpush.msra.mxu0 0.0
      %364 = vmatpush.msra.mxu0 %v179
      %365 = vmatpush.msra.mxu0 %v172
      %366 = vmatmul.f32.gmra.mxu0 %v348
      %v367 = vpop.f32.mrf.mxu0
      %v368 = vadd.f32 %v225, %v367
      %369 = vdwg.mxu0
      %370 = vmatpush.msra.mxu0 0.0
      %371 = vmatpush.msra.mxu0 0.0
      %372 = vmatpush.msra.mxu0 0.0
      %373 = vmatpush.msra.mxu0 0.0
      %374 = vmatpush.msra.mxu0 0.0
      %375 = vmatpush.msra.mxu0 0.0
      %376 = vmatpush.msra.mxu0 0.0
      %377 = vmatpush.msra.mxu0 0.0
      %378 = vmatpush.msra.mxu0 0.0
      %379 = vmatpush.msra.mxu0 0.0
      %380 = vmatpush.msra.mxu0 0.0
      %381 = vmatpush.msra.mxu0 0.0
      %382 = vmatpush.msra.mxu0 0.0
      %383 = vmatpush.msra.mxu0 0.0
      %384 = vmatpush.msra.mxu0 %v180
      %385 = vmatpush.msra.mxu0 %v173
      %386 = vmatmul.f32.gmra.mxu0 %v348
      %v387 = vpop.f32.mrf.mxu0
      %v388 = vadd.f32 %v245, %v387
      %389 = vdwg.mxu0
      %390 = vmatpush.msra.mxu0 0.0
      %391 = vmatpush.msra.mxu0 0.0
      %392 = vmatpush.msra.mxu0 0.0
      %393 = vmatpush.msra.mxu0 0.0
      %394 = vmatpush.msra.mxu0 0.0
      %395 = vmatpush.msra.mxu0 0.0
      %396 = vmatpush.msra.mxu0 0.0
      %397 = vmatpush.msra.mxu0 0.0
      %398 = vmatpush.msra.mxu0 0.0
      %399 = vmatpush.msra.mxu0 0.0
      %400 = vmatpush.msra.mxu0 0.0
      %401 = vmatpush.msra.mxu0 0.0
      %402 = vmatpush.msra.mxu0 0.0
      %403 = vmatpush.msra.mxu0 0.0
      %404 = vmatpush.msra.mxu0 %v181
      %405 = vmatpush.msra.mxu0 %v174
      %406 = vmatmul.f32.gmra.mxu0 %v348
      %v407 = vpop.f32.mrf.mxu0
      %v408 = vadd.f32 %v265, %v407
      %409 = vdwg.mxu0
      %410 = vmatpush.msra.mxu0 0.0
      %411 = vmatpush.msra.mxu0 0.0
      %412 = vmatpush.msra.mxu0 0.0
      %413 = vmatpush.msra.mxu0 0.0
      %414 = vmatpush.msra.mxu0 0.0
      %415 = vmatpush.msra.mxu0 0.0
      %416 = vmatpush.msra.mxu0 0.0
      %417 = vmatpush.msra.mxu0 0.0
      %418 = vmatpush.msra.mxu0 0.0
      %419 = vmatpush.msra.mxu0 0.0
      %420 = vmatpush.msra.mxu0 0.0
      %421 = vmatpush.msra.mxu0 0.0
      %422 = vmatpush.msra.mxu0 0.0
      %423 = vmatpush.msra.mxu0 0.0
      %424 = vmatpush.msra.mxu0 %v182
      %425 = vmatpush.msra.mxu0 %v175
      %426 = vmatmul.f32.gmra.mxu0 %v348
      %v427 = vpop.f32.mrf.mxu0
      %v428 = vadd.f32 %v285, %v427
      %429 = vdwg.mxu0
      %430 = vmatpush.msra.mxu0 0.0
      %431 = vmatpush.msra.mxu0 0.0
      %432 = vmatpush.msra.mxu0 0.0
      %433 = vmatpush.msra.mxu0 0.0
      %434 = vmatpush.msra.mxu0 0.0
      %435 = vmatpush.msra.mxu0 0.0
      %436 = vmatpush.msra.mxu0 0.0
      %437 = vmatpush.msra.mxu0 0.0
      %438 = vmatpush.msra.mxu0 0.0
      %439 = vmatpush.msra.mxu0 0.0
      %440 = vmatpush.msra.mxu0 0.0
      %441 = vmatpush.msra.mxu0 0.0
      %442 = vmatpush.msra.mxu0 0.0
      %443 = vmatpush.msra.mxu0 0.0
      %444 = vmatpush.msra.mxu0 %v183
      %445 = vmatpush.msra.mxu0 %v176
      %446 = vmatmul.f32.gmra.mxu0 %v348
      %v447 = vpop.f32.mrf.mxu0
      %v448 = vadd.f32 %v305, %v447
      %449 = vdwg.mxu0
      %450 = vmatpush.msra.mxu0 0.0
      %451 = vmatpush.msra.mxu0 0.0
      %452 = vmatpush.msra.mxu0 0.0
      %453 = vmatpush.msra.mxu0 0.0
      %454 = vmatpush.msra.mxu0 0.0
      %455 = vmatpush.msra.mxu0 0.0
      %456 = vmatpush.msra.mxu0 0.0
      %457 = vmatpush.msra.mxu0 0.0
      %458 = vmatpush.msra.mxu0 0.0
      %459 = vmatpush.msra.mxu0 0.0
      %460 = vmatpush.msra.mxu0 0.0
      %461 = vmatpush.msra.mxu0 0.0
      %462 = vmatpush.msra.mxu0 0.0
      %463 = vmatpush.msra.mxu0 0.0
      %464 = vmatpush.msra.mxu0 %v184
      %465 = vmatpush.msra.mxu0 %v177
      %466 = vmatmul.f32.gmra.mxu0 %v348
      %v467 = vpop.f32.mrf.mxu0
      %v468 = vadd.f32 %v325, %v467
      %469 = vdwg.mxu0
      %470 = vmatpush.msra.mxu0 0.0
      %471 = vmatpush.msra.mxu0 0.0
      %472 = vmatpush.msra.mxu0 0.0
      %473 = vmatpush.msra.mxu0 0.0
      %474 = vmatpush.msra.mxu0 0.0
      %475 = vmatpush.msra.mxu0 0.0
      %476 = vmatpush.msra.mxu0 0.0
      %477 = vmatpush.msra.mxu0 0.0
      %478 = vmatpush.msra.mxu0 0.0
      %479 = vmatpush.msra.mxu0 0.0
      %480 = vmatpush.msra.mxu0 0.0
      %481 = vmatpush.msra.mxu0 0.0
      %482 = vmatpush.msra.mxu0 0.0
      %483 = vmatpush.msra.mxu0 0.0
      %484 = vmatpush.msra.mxu0 %v185
      %485 = vmatpush.msra.mxu0 %v178
      %486 = vmatmul.f32.gmra.mxu0 %v348
      %v487 = vpop.f32.mrf.mxu0
      %v488 = vadd.f32 %v345, %v487
      %489 = vdwg.mxu0
      %s490 = scalar_lea.vmem %s165, 2
      %v491 = vld [vmem:[%s490] ss:$2 sm:$0x7f]
      %s492 = scalar_lea.vmem %s1, 224
      %v493 = vld [vmem:[%s492] sm:$0xff]
      %v494 = vld [vmem:[%s492 + $0x8] sm:$0xff]
      %v495 = vld [vmem:[%s492 + $0x10] sm:$0xff]
      %v496 = vld [vmem:[%s492 + $0x18] sm:$0xff]
      %v497 = vld [vmem:[%s492 + $0x20] sm:$0xff]
      %v498 = vld [vmem:[%s492 + $0x28] sm:$0xff]
      %v499 = vld [vmem:[%s492 + $0x30] sm:$0xff]
      %v500 = vld [vmem:[%s492 + $0x38] sm:$0xff]
      %v501 = vld [vmem:[%s492 + $0x40] sm:$0xff]
      %v502 = vld [vmem:[%s492 + $0x48] sm:$0xff]
      %v503 = vld [vmem:[%s492 + $0x50] sm:$0xff]
      %v504 = vld [vmem:[%s492 + $0x58] sm:$0xff]
      %v505 = vld [vmem:[%s492 + $0x60] sm:$0xff]
      %v506 = vld [vmem:[%s492 + $0x68] sm:$0xff]
      %v508 = vsel %vm203, %v491, 0
      %510 = vmatpush.msra.mxu0 0.0
      %511 = vmatpush.msra.mxu0 0.0
      %512 = vmatpush.msra.mxu0 0.0
      %513 = vmatpush.msra.mxu0 0.0
      %514 = vmatpush.msra.mxu0 0.0
      %515 = vmatpush.msra.mxu0 0.0
      %516 = vmatpush.msra.mxu0 0.0
      %517 = vmatpush.msra.mxu0 0.0
      %518 = vmatpush.msra.mxu0 0.0
      %519 = vmatpush.msra.mxu0 0.0
      %520 = vmatpush.msra.mxu0 0.0
      %521 = vmatpush.msra.mxu0 0.0
      %522 = vmatpush.msra.mxu0 0.0
      %523 = vmatpush.msra.mxu0 0.0
      %524 = vmatpush.msra.mxu0 %v500
      %525 = vmatpush.msra.mxu0 %v493
      %526 = vmatmul.f32.gmra.mxu0 %v508
      %v527 = vpop.f32.mrf.mxu0
      %v528 = vadd.f32 0.0, %v527
      %529 = vdwg.mxu0
      %530 = vmatpush.msra.mxu0 0.0
      %531 = vmatpush.msra.mxu0 0.0
      %532 = vmatpush.msra.mxu0 0.0
      %533 = vmatpush.msra.mxu0 0.0
      %534 = vmatpush.msra.mxu0 0.0
      %535 = vmatpush.msra.mxu0 0.0
      %536 = vmatpush.msra.mxu0 0.0
      %537 = vmatpush.msra.mxu0 0.0
      %538 = vmatpush.msra.mxu0 0.0
      %539 = vmatpush.msra.mxu0 0.0
      %540 = vmatpush.msra.mxu0 0.0
      %541 = vmatpush.msra.mxu0 0.0
      %542 = vmatpush.msra.mxu0 0.0
      %543 = vmatpush.msra.mxu0 0.0
      %544 = vmatpush.msra.mxu0 %v501
      %545 = vmatpush.msra.mxu0 %v494
      %546 = vmatmul.f32.gmra.mxu0 %v508
      %v547 = vpop.f32.mrf.mxu0
      %v548 = vadd.f32 0.0, %v547
      %549 = vdwg.mxu0
      %550 = vmatpush.msra.mxu0 0.0
      %551 = vmatpush.msra.mxu0 0.0
      %552 = vmatpush.msra.mxu0 0.0
      %553 = vmatpush.msra.mxu0 0.0
      %554 = vmatpush.msra.mxu0 0.0
      %555 = vmatpush.msra.mxu0 0.0
      %556 = vmatpush.msra.mxu0 0.0
      %557 = vmatpush.msra.mxu0 0.0
      %558 = vmatpush.msra.mxu0 0.0
      %559 = vmatpush.msra.mxu0 0.0
      %560 = vmatpush.msra.mxu0 0.0
      %561 = vmatpush.msra.mxu0 0.0
      %562 = vmatpush.msra.mxu0 0.0
      %563 = vmatpush.msra.mxu0 0.0
      %564 = vmatpush.msra.mxu0 %v502
      %565 = vmatpush.msra.mxu0 %v495
      %566 = vmatmul.f32.gmra.mxu0 %v508
      %v567 = vpop.f32.mrf.mxu0
      %v568 = vadd.f32 0.0, %v567
      %569 = vdwg.mxu0
      %570 = vmatpush.msra.mxu0 0.0
      %571 = vmatpush.msra.mxu0 0.0
      %572 = vmatpush.msra.mxu0 0.0
      %573 = vmatpush.msra.mxu0 0.0
      %574 = vmatpush.msra.mxu0 0.0
      %575 = vmatpush.msra.mxu0 0.0
      %576 = vmatpush.msra.mxu0 0.0
      %577 = vmatpush.msra.mxu0 0.0
      %578 = vmatpush.msra.mxu0 0.0
      %579 = vmatpush.msra.mxu0 0.0
      %580 = vmatpush.msra.mxu0 0.0
      %581 = vmatpush.msra.mxu0 0.0
      %582 = vmatpush.msra.mxu0 0.0
      %583 = vmatpush.msra.mxu0 0.0
      %584 = vmatpush.msra.mxu0 %v503
      %585 = vmatpush.msra.mxu0 %v496
      %586 = vmatmul.f32.gmra.mxu0 %v508
      %v587 = vpop.f32.mrf.mxu0
      %v588 = vadd.f32 0.0, %v587
      %589 = vdwg.mxu0
      %590 = vmatpush.msra.mxu0 0.0
      %591 = vmatpush.msra.mxu0 0.0
      %592 = vmatpush.msra.mxu0 0.0
      %593 = vmatpush.msra.mxu0 0.0
      %594 = vmatpush.msra.mxu0 0.0
      %595 = vmatpush.msra.mxu0 0.0
      %596 = vmatpush.msra.mxu0 0.0
      %597 = vmatpush.msra.mxu0 0.0
      %598 = vmatpush.msra.mxu0 0.0
      %599 = vmatpush.msra.mxu0 0.0
      %600 = vmatpush.msra.mxu0 0.0
      %601 = vmatpush.msra.mxu0 0.0
      %602 = vmatpush.msra.mxu0 0.0
      %603 = vmatpush.msra.mxu0 0.0
      %604 = vmatpush.msra.mxu0 %v504
      %605 = vmatpush.msra.mxu0 %v497
      %606 = vmatmul.f32.gmra.mxu0 %v508
      %v607 = vpop.f32.mrf.mxu0
      %v608 = vadd.f32 0.0, %v607
      %609 = vdwg.mxu0
      %610 = vmatpush.msra.mxu0 0.0
      %611 = vmatpush.msra.mxu0 0.0
      %612 = vmatpush.msra.mxu0 0.0
      %613 = vmatpush.msra.mxu0 0.0
      %614 = vmatpush.msra.mxu0 0.0
      %615 = vmatpush.msra.mxu0 0.0
      %616 = vmatpush.msra.mxu0 0.0
      %617 = vmatpush.msra.mxu0 0.0
      %618 = vmatpush.msra.mxu0 0.0
      %619 = vmatpush.msra.mxu0 0.0
      %620 = vmatpush.msra.mxu0 0.0
      %621 = vmatpush.msra.mxu0 0.0
      %622 = vmatpush.msra.mxu0 0.0
      %623 = vmatpush.msra.mxu0 0.0
      %624 = vmatpush.msra.mxu0 %v505
      %625 = vmatpush.msra.mxu0 %v498
      %626 = vmatmul.f32.gmra.mxu0 %v508
      %v627 = vpop.f32.mrf.mxu0
      %v628 = vadd.f32 0.0, %v627
      %629 = vdwg.mxu0
      %630 = vmatpush.msra.mxu0 0.0
      %631 = vmatpush.msra.mxu0 0.0
      %632 = vmatpush.msra.mxu0 0.0
      %633 = vmatpush.msra.mxu0 0.0
      %634 = vmatpush.msra.mxu0 0.0
      %635 = vmatpush.msra.mxu0 0.0
      %636 = vmatpush.msra.mxu0 0.0
      %637 = vmatpush.msra.mxu0 0.0
      %638 = vmatpush.msra.mxu0 0.0
      %639 = vmatpush.msra.mxu0 0.0
      %640 = vmatpush.msra.mxu0 0.0
      %641 = vmatpush.msra.mxu0 0.0
      %642 = vmatpush.msra.mxu0 0.0
      %643 = vmatpush.msra.mxu0 0.0
      %644 = vmatpush.msra.mxu0 %v506
      %645 = vmatpush.msra.mxu0 %v499
      %646 = vmatmul.f32.gmra.mxu0 %v508
      %v647 = vpop.f32.mrf.mxu0
      %v648 = vadd.f32 0.0, %v647
      %649 = vdwg.mxu0
      %v650 = vadd.f32 %v368, %v528
      %v651 = vadd.f32 %v388, %v548
      %v652 = vadd.f32 %v408, %v568
      %v653 = vadd.f32 %v428, %v588
      %v654 = vadd.f32 %v448, %v608
      %v655 = vadd.f32 %v468, %v628
      %v656 = vadd.f32 %v488, %v648
      %v657 = vld [vmem:[%s2] sm:$0xff]
      %v659 = vperm.slane %v657, 0
      %v660 = vperm.slane %v657, 1
      %v661 = vperm.slane %v657, 2
      %v662 = vperm.slane %v657, 3
      %v663 = vperm.slane %v657, 4
      %v664 = vperm.slane %v657, 5
      %v665 = vperm.slane %v657, 6
      %v673 = vadd.f32 %v650, %v659
      %v674 = vadd.f32 %v651, %v660
      %v675 = vadd.f32 %v652, %v661
      %v676 = vadd.f32 %v653, %v662
      %v677 = vadd.f32 %v654, %v663
      %v678 = vadd.f32 %v655, %v664
      %v679 = vadd.f32 %v656, %v665
      %680 = vst [vmem:[%s170] sm:$0x7f] %v673
      %681 = vst [vmem:[%s170 + $0x8] sm:$0x7f] %v674
      %682 = vst [vmem:[%s170 + $0x10] sm:$0x7f] %v675
      %683 = vst [vmem:[%s170 + $0x18] sm:$0x7f] %v676
      %684 = vst [vmem:[%s170 + $0x20] sm:$0x7f] %v677
      %685 = vst [vmem:[%s170 + $0x28] sm:$0x7f] %v678
      %686 = vst [vmem:[%s170 + $0x30] sm:$0x7f] %v679
      %p687 = scmp.lt.s32.totalorder %s14, 1
      %s688 = scalar_select %p687, %s14, 1
      %s689 = smul.addr %s688, 7
      %s690 = smul.addr %s689, 8
      %s691 = scalar_lea.vmem %s3, %s690
      // Predicated region
      $region33: #{torch_conv_forward.1} parent=31 // pred_check
        %p692 = pneg %p100
      $region34: #{torch_conv_forward.1} parent=31 // pred_check_branch
        %694 = sbr.rel (%p692) target = $region36
      $region35: #{torch_conv_forward.1} parent=31 // pred_region
        _
      $region36: #{torch_conv_forward.1} parent=31 // pred_fallthru
        _
    $region32: #{torch_conv_forward.1} parent=5 // pred_fallthru
      _
    %p695 = scmp.le.s32.totalorder 2, %s9
    // Predicated region
    $region37: #{torch_conv_forward.1} parent=5 // pred_check
      %p696 = pneg %p695
    $region38: #{torch_conv_forward.1} parent=5 // pred_check_branch
      %698 = sbr.rel (%p696) target = $region40
    $region39: #{torch_conv_forward.1} parent=5 // pred_region
      %s699 = ssub.s32 %s9, 2
      // Predicated region
      $region41: #{torch_conv_forward.1} parent=39 // pred_check
        %p700 = pneg %p106
      $region42: #{torch_conv_forward.1} parent=39 // pred_check_branch
        %702 = sbr.rel (%p700) target = $region44
      $region43: #{torch_conv_forward.1} parent=39 // pred_region
        %p703 = scmp.lt.s32.totalorder %s15, 1
        %s704 = scalar_select %p703, %s15, 1
        %s705 = smul.addr %s704, 7
        %s706 = smul.addr %s705, 8
        %s707 = scalar_lea.vmem %s3, %s706
      $region44: #{torch_conv_forward.1} parent=39 // pred_fallthru
        _
    $region40: #{torch_conv_forward.1} parent=5 // pred_fallthru
      _
  $region6: #{torch_conv_forward.1} parent=0 // loop_footer
    %s13 = sadd.s32 1, %s9
  $region7: #{torch_conv_forward.1} parent=0 // loop_footer_branch
    %8 = sbr.rel target = $region3
  $region8: #{torch_conv_forward.1} parent=0 // loop_exit
    _

</llo_original>
